<compile_context>
chip_gen: v6e
topology: v6e:2x2x1
jax: 0.10.0
libtpu: 0.0.40
codegen_flags: <defaults>
</compile_context>

<pallas_src>
import functools

import jax
import jax.numpy as jnp
from jax.experimental import pallas as pl
from jax.experimental.pallas import tpu as pltpu


def _pick_vmem_limit_bytes():
    """Generation-aware scoped-VMEM budget (~75% of physical, capped at 100 MiB)."""
    cap = None
    try:
        cap = getattr(pltpu.get_tpu_info(), "vmem_capacity_bytes", None)
    except Exception:
        cap = None
    if not cap:
        cap = 64 * 1024 * 1024  # assume the smallest current part (v7x: 64 MiB)
    return int(min(cap - cap // 4, 100 * 1024 * 1024))


_VMEM_LIMIT_BYTES = _pick_vmem_limit_bytes()


def _head_kernel(x_ref, w1_ref, b1_ref, w2_ref, b2_ref, o_ref, *, out_dim):
    """Fused dense -> relu -> out_proj -> log_softmax for one batch tile.

    x_ref:  (TB, in_dim)       f32  (cast to bf16 in-kernel; VPU cast hides under MXU)
    w1_ref: (in_dim, in_dim)   bf16 (grid-invariant, single-buffered)
    b1_ref: (1, in_dim)        f32
    w2_ref: (in_dim, out_pad)  bf16 (zero-padded columns -> lane-dense matmul)
    b2_ref: (1, out_pad)       f32  (-1e30 in padded lanes)
    o_ref:  (TB, out_dim)      f32  (only the real lanes are written back)
    """
    x = x_ref[...].astype(jnp.bfloat16)

    # dense: Linear(in_dim, in_dim) + ReLU  (bf16 MXU inputs, f32 accumulate)
    h = jnp.dot(x, w1_ref[...], preferred_element_type=jnp.float32)
    h = jnp.maximum(h + b1_ref[...], 0.0)

    # dropout: identity (inference)

    # out_proj: Linear(in_dim, out_pad)  (bf16 MXU inputs, f32 accumulate)
    logits = jnp.dot(h.astype(jnp.bfloat16), w2_ref[...],
                     preferred_element_type=jnp.float32)
    logits = logits + b2_ref[...]          # padded lanes pushed to ~-1e30

    # LogSoftmax(dim=-1), numerically stable. Padded lanes contribute exp(~-1e30)=0.
    m = jnp.max(logits, axis=-1, keepdims=True)
    shifted = logits - m
    lse = jnp.log(jnp.sum(jnp.exp(shifted), axis=-1, keepdims=True))
    o_ref[...] = (shifted - lse)[:, :out_dim].astype(o_ref.dtype)


def prepare_params(w1, b1, w2, b2):
    """One-time (parameter-load-time) conversion into the kernel layout.

    Weights are stored pre-transposed as (in_features, out_features). Returns
    (w1 bf16, b1 f32 [1,in], padded w2 bf16 [in,out_pad], padded b2 f32 [1,out_pad]).
    """
    in_dim = w1.shape[0]
    out_dim = w2.shape[1]
    out_pad = ((out_dim + 127) // 128) * 128      # lane-dense matmul width

    w1_bf = w1.astype(jnp.bfloat16)
    b1_2d = b1.reshape(1, in_dim).astype(jnp.float32)
    w2_p = jnp.zeros((in_dim, out_pad), jnp.bfloat16)
    w2_p = w2_p.at[:, :out_dim].set(w2.astype(jnp.bfloat16))
    # Padded lanes get a huge negative bias so they vanish under log-softmax.
    b2_p = jnp.full((1, out_pad), -1e30, jnp.float32)
    b2_p = b2_p.at[:, :out_dim].set(b2.reshape(1, out_dim).astype(jnp.float32))
    return w1_bf, b1_2d, w2_p, b2_p


@functools.partial(jax.jit, static_argnames=("out_dim", "block_b"))
def prediction_head_forward(x_s, w1_bf, b1_2d, w2_p, b2_p, *, out_dim, block_b=256):
    """x_s: (B, in_dim) f32 encoder features; params from prepare_params().

    Returns (B, out_dim) f32 log-probabilities.
    """
    B, in_dim = x_s.shape
    out_pad = w2_p.shape[1]

    # Batch tile: as large as block_b (multiple of 8 sublanes, or the full batch),
    # but keep >= 2 grid steps when the batch allows so the "parallel" axis can
    # use both TensorCores on megacore parts (v7x); harmless on v5e/v6e.
    tb = min(block_b, B)
    if B >= 16 and pl.cdiv(B, tb) < 2:
        tb = pl.cdiv(B, 2)
    if tb != B:
        tb = max(8, ((tb + 7) // 8) * 8)
    grid = (pl.cdiv(B, tb),)

    kernel = functools.partial(_head_kernel, out_dim=out_dim)

    # Grid-invariant operands: constant index_map, so single-buffer them (no point
    # allocating a second copy of weights that never change).
    resident = dict(pipeline_mode=pl.Buffered(1))

    # Advisory cost estimate so XLA can schedule the opaque encoder around us.
    cost = pl.CostEstimate(
        flops=2 * B * in_dim * (in_dim + out_pad),
        transcendentals=B * (out_pad + 1),
        bytes_accessed=(B * in_dim * 4 + in_dim * in_dim * 2
                        + in_dim * out_pad * 2 + in_dim * 4 + out_pad * 4
                        + B * out_dim * 4),
    )

    return pl.pallas_call(
        kernel,
        out_shape=jax.ShapeDtypeStruct((B, out_dim), jnp.float32),
        grid_spec=pltpu.PrefetchScalarGridSpec(
            num_scalar_prefetch=0,
            grid=grid,
            in_specs=[
                pl.BlockSpec((tb, in_dim), lambda i: (i, 0)),                    # x
                pl.BlockSpec((in_dim, in_dim), lambda i: (0, 0), **resident),    # w1
                pl.BlockSpec((1, in_dim), lambda i: (0, 0), **resident),         # b1
                pl.BlockSpec((in_dim, out_pad), lambda i: (0, 0), **resident),   # w2
                pl.BlockSpec((1, out_pad), lambda i: (0, 0), **resident),        # b2
            ],
            out_specs=pl.BlockSpec((tb, out_dim), lambda i: (i, 0)),
        ),
        compiler_params=pltpu.CompilerParams(
            dimension_semantics=("parallel",),          # batch axis -> megacore
            vmem_limit_bytes=_VMEM_LIMIT_BYTES,
        ),
        cost_estimate=cost,
    )(x_s, w1_bf, b1_2d, w2_p, b2_p)


def init_params(key, in_dim, out_dim):
    """Deterministic init mimicking nn.Linear's uniform(-1/sqrt(fan_in), ...)."""
    k1, k2, k3, k4 = jax.random.split(key, 4)
    bound = 1.0 / jnp.sqrt(in_dim)
    # Stored pre-transposed: (in_features, out_features)
    w1 = jax.random.uniform(k1, (in_dim, in_dim), jnp.float32, -bound, bound)
    b1 = jax.random.uniform(k2, (in_dim,), jnp.float32, -bound, bound)
    w2 = jax.random.uniform(k3, (in_dim, out_dim), jnp.float32, -bound, bound)
    b2 = jax.random.uniform(k4, (out_dim,), jnp.float32, -bound, bound)
    return w1, b1, w2, b2


def reference_forward(x_s, w1, b1, w2, b2):
    """Pure-JAX reference mirroring the kernel's bf16 matmul inputs / f32 math."""
    xb = x_s.astype(jnp.bfloat16).astype(jnp.float32)
    w1b = w1.astype(jnp.bfloat16).astype(jnp.float32)
    w2b = w2.astype(jnp.bfloat16).astype(jnp.float32)
    h = jnp.maximum(xb @ w1b + b1.reshape(1, -1), 0.0)
    hb = h.astype(jnp.bfloat16).astype(jnp.float32)
    logits = hb @ w2b + b2.reshape(1, -1)
    return jax.nn.log_softmax(logits, axis=-1)


if __name__ == "__main__":
    key = jax.random.PRNGKey(0)
    k_x, k_p = jax.random.split(key)

    # Small but tiling-exercising shapes: with block_b=256 and the >=2-step rule,
    # the grid is (2,) batch tiles of 128 rows.
    B, in_dim, out_dim = 256, 128, 4
    # x_s plays the role of encoder.getVector(batch)[0]
    x_s = jax.random.normal(k_x, (B, in_dim), jnp.float32)
    w1, b1, w2, b2 = init_params(k_p, in_dim, out_dim)

    # One-time conversion (parameter-load time), not on the per-call path.
    params = jax.block_until_ready(prepare_params(w1, b1, w2, b2))

    out = prediction_head_forward(x_s, *params, out_dim=out_dim)
    out = jax.block_until_ready(out)

    ref = reference_forward(x_s, w1, b1, w2, b2)
    assert out.shape == (B, out_dim)
    max_err = float(jnp.max(jnp.abs(out - ref)))
    assert jnp.allclose(out, ref, atol=2e-3, rtol=2e-3), max_err

    print("KERNEL_OK")
</pallas_src>

<mosaic_0001>
module attributes {stable_mosaic.version = 11 : i64} {
  func.func @_head_kernel(%arg0: i32, %arg1: memref<128x128xf32, #tpu.memory_space<vmem>>, %arg2: memref<128x128xbf16, #tpu.memory_space<vmem>>, %arg3: memref<1x128xf32, #tpu.memory_space<vmem>>, %arg4: memref<128x128xbf16, #tpu.memory_space<vmem>>, %arg5: memref<1x128xf32, #tpu.memory_space<vmem>>, %arg6: memref<128x4xf32, #tpu.memory_space<vmem>>) attributes {dimension_semantics = [#tpu.dimension_semantics<parallel>], iteration_bounds = array<i64: 2>, scalar_prefetch = 0 : i64, scratch_operands = 0 : i64, tpu.core_type = #tpu.core_type<tc>, window_params = [{transform_indices = @transform_0, window_bounds = array<i64: 128, 128>}, {pipeline_mode = #tpu.pipeline_mode<synchronous>, transform_indices = @transform_1, window_bounds = array<i64: 128, 128>}, {pipeline_mode = #tpu.pipeline_mode<synchronous>, transform_indices = @transform_2, window_bounds = array<i64: 1, 128>}, {pipeline_mode = #tpu.pipeline_mode<synchronous>, transform_indices = @transform_3, window_bounds = array<i64: 128, 128>}, {pipeline_mode = #tpu.pipeline_mode<synchronous>, transform_indices = @transform_4, window_bounds = array<i64: 1, 128>}, {transform_indices = @transform_5, window_bounds = array<i64: 128, 4>}]} {
    %c0 = arith.constant 0 : index
    %c0_0 = arith.constant 0 : index
    %0 = vector.load %arg1[%c0, %c0_0] : memref<128x128xf32, #tpu.memory_space<vmem>>, vector<128x128xf32>
    %1 = arith.truncf %0 : vector<128x128xf32> to vector<128x128xbf16>
    %c0_1 = arith.constant 0 : index
    %c0_2 = arith.constant 0 : index
    %2 = vector.load %arg2[%c0_1, %c0_2] : memref<128x128xbf16, #tpu.memory_space<vmem>>, vector<128x128xbf16>
    %cst = arith.constant dense<0.000000e+00> : vector<128x128xf32>
    %3 = tpu.matmul %1, %2, %cst {dimension_numbers = #tpu.dot_dimension_numbers<[1], [0], [0], [1], [0, 0, 1, 1], [], []>} : vector<128x128xbf16>, vector<128x128xbf16>, vector<128x128xf32> -> vector<128x128xf32>
    %c0_3 = arith.constant 0 : index
    %c0_4 = arith.constant 0 : index
    %4 = vector.load %arg3[%c0_3, %c0_4] : memref<1x128xf32, #tpu.memory_space<vmem>>, vector<1x128xf32>
    %5 = vector.broadcast %4 : vector<1x128xf32> to vector<128x128xf32>
    %6 = arith.addf %3, %5 : vector<128x128xf32>
    %cst_5 = arith.constant 0.000000e+00 : f32
    %7 = vector.broadcast %cst_5 : f32 to vector<128x128xf32>
    %8 = arith.maximumf %6, %7 : vector<128x128xf32>
    %9 = arith.truncf %8 : vector<128x128xf32> to vector<128x128xbf16>
    %c0_6 = arith.constant 0 : index
    %c0_7 = arith.constant 0 : index
    %10 = vector.load %arg4[%c0_6, %c0_7] : memref<128x128xbf16, #tpu.memory_space<vmem>>, vector<128x128xbf16>
    %cst_8 = arith.constant dense<0.000000e+00> : vector<128x128xf32>
    %11 = tpu.matmul %9, %10, %cst_8 {dimension_numbers = #tpu.dot_dimension_numbers<[1], [0], [0], [1], [0, 0, 1, 1], [], []>} : vector<128x128xbf16>, vector<128x128xbf16>, vector<128x128xf32> -> vector<128x128xf32>
    %c0_9 = arith.constant 0 : index
    %c0_10 = arith.constant 0 : index
    %12 = vector.load %arg5[%c0_9, %c0_10] : memref<1x128xf32, #tpu.memory_space<vmem>>, vector<1x128xf32>
    %13 = vector.broadcast %12 : vector<1x128xf32> to vector<128x128xf32>
    %14 = arith.addf %11, %13 : vector<128x128xf32>
    %cst_11 = arith.constant dense<0xFF800000> : vector<128xf32>
    %15 = vector.multi_reduction <maximumf>, %14, %cst_11 [1] : vector<128x128xf32> to vector<128xf32>
    %16 = vector.shape_cast %15 : vector<128xf32> to vector<128x1xf32>
    %17 = vector.broadcast %16 : vector<128x1xf32> to vector<128x128xf32>
    %18 = arith.subf %14, %17 : vector<128x128xf32>
    %19 = math.exp %18 : vector<128x128xf32>
    %cst_12 = arith.constant dense<0.000000e+00> : vector<128xf32>
    %20 = vector.multi_reduction <add>, %19, %cst_12 [1] : vector<128x128xf32> to vector<128xf32>
    %21 = vector.shape_cast %20 : vector<128xf32> to vector<128x1xf32>
    %22 = math.log %21 : vector<128x1xf32>
    %23 = vector.broadcast %22 : vector<128x1xf32> to vector<128x128xf32>
    %24 = arith.subf %18, %23 : vector<128x128xf32>
    %25 = vector.extract_strided_slice %24 {offsets = [0, 0], sizes = [128, 4], strides = [1, 1]} : vector<128x128xf32> to vector<128x4xf32>
    %c0_13 = arith.constant 0 : index
    %c0_14 = arith.constant 0 : index
    %26 = vector.load %arg6[%c0_13, %c0_14] : memref<128x4xf32, #tpu.memory_space<vmem>>, vector<128x4xf32>
    tpu.vector_store %arg6[%c0_13, %c0_14], %25 {strides = array<i32>} : memref<128x4xf32, #tpu.memory_space<vmem>>, vector<128x4xf32>,
    return
  }
  func.func @transform_0(%arg0: i32) -> (i32, i32) {
    %c0_i32 = arith.constant 0 : i32
    %c0_i32_0 = arith.constant 0 : i32
    return %arg0, %c0_i32 : i32, i32
  }
  func.func @transform_1(%arg0: i32) -> (i32, i32) {
    %c0_i32 = arith.constant 0 : i32
    %c0_i32_0 = arith.constant 0 : i32
    %c0_i32_1 = arith.constant 0 : i32
    return %c0_i32, %c0_i32_0 : i32, i32
  }
  func.func @transform_2(%arg0: i32) -> (i32, i32) {
    %c0_i32 = arith.constant 0 : i32
    %c0_i32_0 = arith.constant 0 : i32
    %c0_i32_1 = arith.constant 0 : i32
    return %c0_i32, %c0_i32_0 : i32, i32
  }
  func.func @transform_3(%arg0: i32) -> (i32, i32) {
    %c0_i32 = arith.constant 0 : i32
    %c0_i32_0 = arith.constant 0 : i32
    %c0_i32_1 = arith.constant 0 : i32
    return %c0_i32, %c0_i32_0 : i32, i32
  }
  func.func @transform_4(%arg0: i32) -> (i32, i32) {
    %c0_i32 = arith.constant 0 : i32
    %c0_i32_0 = arith.constant 0 : i32
    %c0_i32_1 = arith.constant 0 : i32
    return %c0_i32, %c0_i32_0 : i32, i32
  }
  func.func @transform_5(%arg0: i32) -> (i32, i32) {
    %c0_i32 = arith.constant 0 : i32
    %c0_i32_0 = arith.constant 0 : i32
    return %arg0, %c0_i32 : i32, i32
  }
}

</mosaic_0001>

<llo_original>
// kernel: prediction_head_forward.1
$region0: #{prediction_head_forward.1}
  #allocation0 [shape = 'u32[]', space=smem, size = 0x4, offset = 0x4, fixed_abs, tag = 'smem constant byte address 0x4 - core index']
  #allocation1 [shape = 'u32[144,128]{1,0:T(1,128)}', space=vmem, size = 0x12000, scoped, tag = 'internal scratch']
  %s0 = inlined_call_operand.hbm [shape: f32[256,128], index: 0, kind: input, shape index: {}]
  %s1 = inlined_call_operand.hbm [shape: bf16[128,128], index: 1, kind: input, shape index: {}]
  %s2 = inlined_call_operand.vmem [shape: f32[1,128], index: 2, kind: input, shape index: {}]
  %s3 = inlined_call_operand.hbm [shape: bf16[128,128], index: 3, kind: input, shape index: {}]
  %s4 = inlined_call_operand.vmem [shape: f32[1,128], index: 4, kind: input, shape index: {}]
  %s5 = inlined_call_operand.vmem [shape: f32[256,4], index: 5, kind: output, shape index: {}]
  %s6 = sld [smem:[#allocation0]]
  $region65: #{prediction_head_forward.1} parent=0
    _
  %s8 = ssub.s32 1, %s6
  %s9 = scalar_select 0, %s8, %s6
  $region1: #{prediction_head_forward.1} parent=0
    #allocation2 [shape = 'u8[131072]{0}', space=vmem, size = 0x20000, scoped, tag = 'input window, operand 0']
    #allocation3 [shape = 's32[2]{0}', space=sflag, size = 0x8, scoped, tag = 'scoped memory for prediction_head_forward.1']
    #allocation4 [shape = 'u8[32768]{0}', space=vmem, size = 0x8000, scoped, tag = 'input window, operand 1, single buffered']
    #allocation5 [shape = 's32[1]{0}', space=sflag, size = 0x4, scoped, tag = 'scoped memory for prediction_head_forward.1']
    #allocation6 [shape = 'u8[32768]{0}', space=vmem, size = 0x8000, scoped, tag = 'input window, operand 3, single buffered']
    %10 = vsyncpa [#allocation3], 0
    %s11 = scalar_lea.sflag [#allocation3], 1
    %12 = vsyncpa %s11, 0
    %13 = vsyncpa [#allocation5], 0
    loop: start=0, step=1, limit=4
    $region2: #{prediction_head_forward.1} parent=1 // loop_pre_header
      _
    $region3: #{prediction_head_forward.1} parent=1 // loop_header
      %s15 = sphi 0, %s19
      %p16 = scmp.ge.s32.totalorder %s15, 4
      %s25 = sphi 0, %s27
      %s28 = sphi 0, %s25
      %s29 = sphi 0, %s28
      %s45 = sphi 0, %s29
      %s49 = sphi 0, %s49
      %s51 = sphi 0, %s49
      %s52 = sphi 0, %s51
      %s66 = sphi 0, %s52
      %s70 = sphi 0, %s70
      %s72 = sphi 0, %s70
      %s73 = sphi 0, %s72
      %s87 = sphi 0, %s73
      %s91 = sphi 0, %s91
      %s93 = sphi 0, %s91
      %s94 = sphi 0, %s93
      %s108 = sphi 0, %s94
      %s112 = sphi 0, %s112
      %s114 = sphi 0, %s112
      %s115 = sphi 0, %s114
      %s129 = sphi 0, %s115
      %s135 = sphi 0, %s137
      %s138 = sphi 0, %s135
      %s139 = sphi 0, %s138
      %s155 = sphi 0, %s139
    $region4: #{prediction_head_forward.1} parent=1 // loop_header_branch
      %18 = sbr.rel (%p16) target = $region8
    $region5: #{prediction_head_forward.1} parent=1 // loop_body
      %s20 = ssub.s32 %s15, 1
      %s21 = ssub.s32 %s15, 2
      %s22 = sadd.s32 %s15, 1
      %s23 = ssub.s32 %s15, %s22
      %p24 = scmp.eq.s32.totalorder %s23, 0
      %s26 = sadd.s32 %s25, 1
      %s27 = scalar_select %p24, %s25, %s26
      %p30 = pneg %p24
      %p31 = scmp.eq.s32.totalorder %s15, 1
      %p32 = por %p30, %p31
      %p33 = scmp.ne.s32.totalorder %s25, %s28
      %p34 = scmp.eq.s32.totalorder %s15, 0
      %p35 = por %p33, %p34
      %p36 = scmp.ne.s32.totalorder %s25, %s28
      %p37 = scmp.eq.s32.totalorder %s20, 1
      %p38 = por %p36, %p37
      %p39 = scmp.ne.s32.totalorder %s28, %s29
      %p40 = scmp.eq.s32.totalorder %s20, 0
      %p41 = por %p39, %p40
      %p42 = scmp.ne.s32.totalorder %s28, %s29
      %p43 = scmp.eq.s32.totalorder %s21, 1
      %p44 = por %p42, %p43
      %p46 = scmp.ne.s32.totalorder %s29, %s45
      %p47 = scmp.eq.s32.totalorder %s21, 0
      %p48 = por %p46, %p47
      %s50 = sadd.s32 %s49, 1
      %p53 = scmp.eq.s32.totalorder %s15, 1
      %p54 = scmp.ne.s32.totalorder %s49, %s51
      %p55 = scmp.eq.s32.totalorder %s15, 0
      %p56 = por %p54, %p55
      %p57 = scmp.ne.s32.totalorder %s49, %s51
      %p58 = scmp.eq.s32.totalorder %s20, 1
      %p59 = por %p57, %p58
      %p60 = scmp.ne.s32.totalorder %s51, %s52
      %p61 = scmp.eq.s32.totalorder %s20, 0
      %p62 = por %p60, %p61
      %p63 = scmp.ne.s32.totalorder %s51, %s52
      %p64 = scmp.eq.s32.totalorder %s21, 1
      %p65 = por %p63, %p64
      %p67 = scmp.ne.s32.totalorder %s52, %s66
      %p68 = scmp.eq.s32.totalorder %s21, 0
      %p69 = por %p67, %p68
      %s71 = sadd.s32 %s70, 1
      %p74 = scmp.eq.s32.totalorder %s15, 1
      %p75 = scmp.ne.s32.totalorder %s70, %s72
      %p76 = scmp.eq.s32.totalorder %s15, 0
      %p77 = por %p75, %p76
      %p78 = scmp.ne.s32.totalorder %s70, %s72
      %p79 = scmp.eq.s32.totalorder %s20, 1
      %p80 = por %p78, %p79
      %p81 = scmp.ne.s32.totalorder %s72, %s73
      %p82 = scmp.eq.s32.totalorder %s20, 0
      %p83 = por %p81, %p82
      %p84 = scmp.ne.s32.totalorder %s72, %s73
      %p85 = scmp.eq.s32.totalorder %s21, 1
      %p86 = por %p84, %p85
      %p88 = scmp.ne.s32.totalorder %s73, %s87
      %p89 = scmp.eq.s32.totalorder %s21, 0
      %p90 = por %p88, %p89
      %s92 = sadd.s32 %s91, 1
      %p95 = scmp.eq.s32.totalorder %s15, 1
      %p96 = scmp.ne.s32.totalorder %s91, %s93
      %p97 = scmp.eq.s32.totalorder %s15, 0
      %p98 = por %p96, %p97
      %p99 = scmp.ne.s32.totalorder %s91, %s93
      %p100 = scmp.eq.s32.totalorder %s20, 1
      %p101 = por %p99, %p100
      %p102 = scmp.ne.s32.totalorder %s93, %s94
      %p103 = scmp.eq.s32.totalorder %s20, 0
      %p104 = por %p102, %p103
      %p105 = scmp.ne.s32.totalorder %s93, %s94
      %p106 = scmp.eq.s32.totalorder %s21, 1
      %p107 = por %p105, %p106
      %p109 = scmp.ne.s32.totalorder %s94, %s108
      %p110 = scmp.eq.s32.totalorder %s21, 0
      %p111 = por %p109, %p110
      %s113 = sadd.s32 %s112, 1
      %p116 = scmp.eq.s32.totalorder %s15, 1
      %p117 = scmp.ne.s32.totalorder %s112, %s114
      %p118 = scmp.eq.s32.totalorder %s15, 0
      %p119 = por %p117, %p118
      %p120 = scmp.ne.s32.totalorder %s112, %s114
      %p121 = scmp.eq.s32.totalorder %s20, 1
      %p122 = por %p120, %p121
      %p123 = scmp.ne.s32.totalorder %s114, %s115
      %p124 = scmp.eq.s32.totalorder %s20, 0
      %p125 = por %p123, %p124
      %p126 = scmp.ne.s32.totalorder %s114, %s115
      %p127 = scmp.eq.s32.totalorder %s21, 1
      %p128 = por %p126, %p127
      %p130 = scmp.ne.s32.totalorder %s115, %s129
      %p131 = scmp.eq.s32.totalorder %s21, 0
      %p132 = por %p130, %p131
      %s133 = ssub.s32 %s15, %s22
      %p134 = scmp.eq.s32.totalorder %s133, 0
      %s136 = sadd.s32 %s135, 1
      %s137 = scalar_select %p134, %s135, %s136
      %p140 = pneg %p134
      %p141 = scmp.eq.s32.totalorder %s15, 1
      %p142 = por %p140, %p141
      %p143 = scmp.ne.s32.totalorder %s135, %s138
      %p144 = scmp.eq.s32.totalorder %s15, 0
      %p145 = por %p143, %p144
      %p146 = scmp.ne.s32.totalorder %s135, %s138
      %p147 = scmp.eq.s32.totalorder %s20, 1
      %p148 = por %p146, %p147
      %p149 = scmp.ne.s32.totalorder %s138, %s139
      %p150 = scmp.eq.s32.totalorder %s20, 0
      %p151 = por %p149, %p150
      %p152 = scmp.ne.s32.totalorder %s138, %s139
      %p153 = scmp.eq.s32.totalorder %s21, 1
      %p154 = por %p152, %p153
      %p156 = scmp.ne.s32.totalorder %s139, %s155
      %p157 = scmp.eq.s32.totalorder %s21, 0
      %p158 = por %p156, %p157
      %p159 = scmp.le.s32.totalorder 1, %s15
      %p160 = scmp.lt.s32.totalorder %s15, 3
      %p161 = pnand %p159, %p160
      %p162 = pneg %p161
      // Predicated region
      $region9: #{prediction_head_forward.1} parent=5 // pred_check
        _
      $region10: #{prediction_head_forward.1} parent=5 // pred_check_branch
        %164 = sbr.rel (%p161) target = $region12
      $region11: #{prediction_head_forward.1} parent=5 // pred_region
        %s165 = ssub.s32 %s15, 1
        // Predicated region
        $region13: #{prediction_head_forward.1} parent=11 // pred_check
          %p166 = pneg %p62
        $region14: #{prediction_head_forward.1} parent=11 // pred_check_branch
          %168 = sbr.rel (%p166) target = $region16
        $region15: #{prediction_head_forward.1} parent=11 // pred_region
          %s170 = ssub.s32 1024, 1024
          %171 = vsyncadd [#allocation5], %s170
          %s172 = sshll.u32 [#allocation4], 4
          %s173 = int_to_ptr.vmem [resolvable:$true] %s172
          %178 = dma.hbm_to_vmem [thread:$0]  %s1, 1024, %s173, [#allocation5], 64, 64, 4
        $region16: #{prediction_head_forward.1} parent=11 // pred_fallthru
          _
        // Predicated region
        $region17: #{prediction_head_forward.1} parent=11 // pred_check
          %p179 = pneg %p83
        $region18: #{prediction_head_forward.1} parent=11 // pred_check_branch
          %181 = sbr.rel (%p179) target = $region20
        $region19: #{prediction_head_forward.1} parent=11 // pred_region
          _
        $region20: #{prediction_head_forward.1} parent=11 // pred_fallthru
          _
        // Predicated region
        $region21: #{prediction_head_forward.1} parent=11 // pred_check
          %p182 = pneg %p104
        $region22: #{prediction_head_forward.1} parent=11 // pred_check_branch
          %184 = sbr.rel (%p182) target = $region24
        $region23: #{prediction_head_forward.1} parent=11 // pred_region
          %s186 = ssub.s32 1024, 1024
          %187 = vsyncadd [#allocation5], %s186
          %s188 = sshll.u32 [#allocation6], 4
          %s189 = int_to_ptr.vmem [resolvable:$true] %s188
          %194 = dma.hbm_to_vmem [thread:$0]  %s3, 1024, %s189, [#allocation5], 64, 64, 4
        $region24: #{prediction_head_forward.1} parent=11 // pred_fallthru
          _
        // Predicated region
        $region25: #{prediction_head_forward.1} parent=11 // pred_check
          %p195 = pneg %p125
        $region26: #{prediction_head_forward.1} parent=11 // pred_check_branch
          %197 = sbr.rel (%p195) target = $region28
        $region27: #{prediction_head_forward.1} parent=11 // pred_region
          _
        $region28: #{prediction_head_forward.1} parent=11 // pred_fallthru
          _
      $region12: #{prediction_head_forward.1} parent=5 // pred_fallthru
        _
      %p198 = scmp.lt.s32.totalorder %s15, 2
      // Predicated region
      $region29: #{prediction_head_forward.1} parent=5 // pred_check
        %p199 = pneg %p198
      $region30: #{prediction_head_forward.1} parent=5 // pred_check_branch
        %201 = sbr.rel (%p199) target = $region32
      $region31: #{prediction_head_forward.1} parent=5 // pred_region
        // Predicated region
        $region33: #{prediction_head_forward.1} parent=31 // pred_check
          %p202 = pneg %p35
        $region34: #{prediction_head_forward.1} parent=31 // pred_check_branch
          %204 = sbr.rel (%p202) target = $region36
        $region35: #{prediction_head_forward.1} parent=31 // pred_region
          %s205 = sand.u32 %s25, 1
          %s206 = scalar_lea.sflag [#allocation3], %s205
          %s207 = sand.u32 %s25, 1
          %s208 = smul.addr %s207, 128
          %s209 = scalar_lea.vmem [#allocation2], %s208
          %s210 = smul.u32 16, %s15
          %s212 = ssub.s32 2048, 2048
          %213 = vsyncadd %s206, %s212
          %s214 = smul.addr %s210, 128
          %s215 = scalar_lea.hbm %s0, %s214
          %s216 = sshll.u32 %s209, 4
          %s217 = int_to_ptr.vmem [resolvable:$true] %s216
          %222 = dma.hbm_to_vmem [thread:$0]  %s215, 2048, %s217, %s206, 128, 128, 8
        $region36: #{prediction_head_forward.1} parent=31 // pred_fallthru
          _
      $region32: #{prediction_head_forward.1} parent=5 // pred_fallthru
        _
      %p223 = scmp.le.s32.totalorder 1, %s15
      %p224 = scmp.lt.s32.totalorder %s15, 3
      %p225 = pnand %p223, %p224
      %p226 = pneg %p225
      // Predicated region
      $region37: #{prediction_head_forward.1} parent=5 // pred_check
        _
      $region38: #{prediction_head_forward.1} parent=5 // pred_check_branch
        %228 = sbr.rel (%p225) target = $region40
      $region39: #{prediction_head_forward.1} parent=5 // pred_region
        %s229 = ssub.s32 %s15, 1
        %s230 = sand.u32 %s28, 1
        %s231 = scalar_lea.sflag [#allocation3], %s230
        %s232 = sand.u32 %s28, 1
        %s233 = smul.addr %s232, 128
        %s234 = scalar_lea.vmem [#allocation2], %s233
        // Predicated region
        $region41: #{prediction_head_forward.1} parent=39 // pred_check
          %p235 = pneg %p41
        $region42: #{prediction_head_forward.1} parent=39 // pred_check_branch
          %237 = sbr.rel (%p235) target = $region44
        $region43: #{prediction_head_forward.1} parent=39 // pred_region
          %238 = dma.done %s231, 2048
        $region44: #{prediction_head_forward.1} parent=39 // pred_fallthru
          _
        // Predicated region
        $region45: #{prediction_head_forward.1} parent=39 // pred_check
          %p239 = pneg %p62
        $region46: #{prediction_head_forward.1} parent=39 // pred_check_branch
          %241 = sbr.rel (%p239) target = $region48
        $region47: #{prediction_head_forward.1} parent=39 // pred_region
          %242 = dma.done [#allocation5], 1024
        $region48: #{prediction_head_forward.1} parent=39 // pred_fallthru
          _
        // Predicated region
        $region49: #{prediction_head_forward.1} parent=39 // pred_check
          %p243 = pneg %p104
        $region50: #{prediction_head_forward.1} parent=39 // pred_check_branch
          %245 = sbr.rel (%p243) target = $region52
        $region51: #{prediction_head_forward.1} parent=39 // pred_region
          %246 = dma.done [#allocation5], 1024
        $region52: #{prediction_head_forward.1} parent=39 // pred_fallthru
          _
        %s247 = sand.u32 %s28, 1
        %s248 = scalar_lea.sflag [#allocation3], %s247
        %s249 = sand.u32 %s28, 1
        %s250 = smul.addr %s249, 128
        %s251 = scalar_lea.vmem [#allocation2], %s250
        %p252 = pneg %p41
        %p253 = pneg %p38
        %p254 = pneg %p62
        %p255 = pneg %p59
        %p256 = pneg %p83
        %p257 = pneg %p80
        %p258 = pneg %p104
        %p259 = pneg %p101
        %p260 = pneg %p125
        %p261 = pneg %p122
        %p262 = pneg %p151
        %p263 = pneg %p148
        %s264 = smul.u32 16, %s20
        %p265 = scmp.lt.s32.totalorder %s264, 31
        %s266 = scalar_select %p265, %s264, 31
        %s267 = smul.addr %s266, 8
        %s268 = scalar_lea.vmem %s5, %s267
        %s269 = smul.u32 16, %s20
        %s270 = smul.u32 16, %s20
        %p271 = scmp.lt.s32.totalorder %s270, 31
        %s272 = scalar_select %p271, %s270, 31
        %s273 = smul.addr %s272, 8
        %s274 = scalar_lea.vmem %s5, %s273
        %s275 = smul.u32 16, %s20
        %v277 = vld [vmem:[%s234] sm:$0xff]
        %v278 = vld [vmem:[%s234 + $0x8] sm:$0xff]
        %v279 = vld [vmem:[%s234 + $0x10] sm:$0xff]
        %v280 = vld [vmem:[%s234 + $0x18] sm:$0xff]
        %v281 = vld [vmem:[%s234 + $0x20] sm:$0xff]
        %v282 = vld [vmem:[%s234 + $0x28] sm:$0xff]
        %v283 = vld [vmem:[%s234 + $0x30] sm:$0xff]
        %v284 = vld [vmem:[%s234 + $0x38] sm:$0xff]
        %v285 = vld [vmem:[%s234 + $0x40] sm:$0xff]
        %v286 = vld [vmem:[%s234 + $0x48] sm:$0xff]
        %v287 = vld [vmem:[%s234 + $0x50] sm:$0xff]
        %v288 = vld [vmem:[%s234 + $0x58] sm:$0xff]
        %v289 = vld [vmem:[%s234 + $0x60] sm:$0xff]
        %v290 = vld [vmem:[%s234 + $0x68] sm:$0xff]
        %v291 = vld [vmem:[%s234 + $0x70] sm:$0xff]
        %v292 = vld [vmem:[%s234 + $0x78] sm:$0xff]
        %v293 = vpack.c.bf16 %v278, %v277
        %v294 = vpack.c.bf16 %v280, %v279
        %v295 = vpack.c.bf16 %v282, %v281
        %v296 = vpack.c.bf16 %v284, %v283
        %v297 = vpack.c.bf16 %v286, %v285
        %v298 = vpack.c.bf16 %v288, %v287
        %v299 = vpack.c.bf16 %v290, %v289
        %v300 = vpack.c.bf16 %v292, %v291
        %v301 = vld [vmem:[#allocation4] sm:$0xf]
        %v302 = vld [vmem:[#allocation4 + $0x4] sm:$0xf]
        %v303 = vld [vmem:[#allocation4 + $0x8] sm:$0xf]
        %v304 = vld [vmem:[#allocation4 + $0xc] sm:$0xf]
        %v305 = vld [vmem:[#allocation4 + $0x10] sm:$0xf]
        %v306 = vld [vmem:[#allocation4 + $0x14] sm:$0xf]
        %v307 = vld [vmem:[#allocation4 + $0x18] sm:$0xf]
        %v308 = vld [vmem:[#allocation4 + $0x1c] sm:$0xf]
        %v309 = vld [vmem:[#allocation4 + $0x20] sm:$0xf]
        %v310 = vld [vmem:[#allocation4 + $0x24] sm:$0xf]
        %v311 = vld [vmem:[#allocation4 + $0x28] sm:$0xf]
        %v312 = vld [vmem:[#allocation4 + $0x2c] sm:$0xf]
        %v313 = vld [vmem:[#allocation4 + $0x30] sm:$0xf]
        %v314 = vld [vmem:[#allocation4 + $0x34] sm:$0xf]
        %v315 = vld [vmem:[#allocation4 + $0x38] sm:$0xf]
        %v316 = vld [vmem:[#allocation4 + $0x3c] sm:$0xf]
        %v317 = vld [vmem:[%s2] sm:$0x1]
        %v319 = vlaneseq
        %v320 = vshrl.u32 %v319, 7
        %v321 = vsub.s32 0, %v320
        %v322 = vrot.slane %v317, %v321
        %v340 = vunpack.c.l.b16 %v301
        %v341 = vunpack.c.l.b16 %v302
        %v342 = vunpack.c.l.b16 %v303
        %v343 = vunpack.c.l.b16 %v304
        %v344 = vunpack.c.l.b16 %v305
        %v345 = vunpack.c.l.b16 %v306
        %v346 = vunpack.c.l.b16 %v307
        %v347 = vunpack.c.l.b16 %v308
        %v348 = vunpack.c.l.b16 %v309
        %v349 = vunpack.c.l.b16 %v310
        %v350 = vunpack.c.l.b16 %v311
        %v351 = vunpack.c.l.b16 %v312
        %v352 = vunpack.c.l.b16 %v313
        %v353 = vunpack.c.l.b16 %v314
        %v354 = vunpack.c.l.b16 %v315
        %v355 = vunpack.c.l.b16 %v316
        %v356 = vpack.c.b16 %v341, %v340
        %v357 = vpack.c.b16 %v343, %v342
        %v358 = vpack.c.b16 %v345, %v344
        %v359 = vpack.c.b16 %v347, %v346
        %v360 = vpack.c.b16 %v349, %v348
        %v361 = vpack.c.b16 %v351, %v350
        %v362 = vpack.c.b16 %v353, %v352
        %v363 = vpack.c.b16 %v355, %v354
        %372 = vmatprep.subr.bf16.mxu0 0
        %373 = vmatpush1.bf16.msra.mxu0 %v363
        %374 = vmatprep.subr.bf16.mxu0 0
        %375 = vmatpush1.bf16.msra.mxu0 %v362
        %376 = vmatprep.subr.bf16.mxu0 0
        %377 = vmatpush1.bf16.msra.mxu0 %v361
        %378 = vmatprep.subr.bf16.mxu0 0
        %379 = vmatpush1.bf16.msra.mxu0 %v360
        %380 = vmatprep.subr.bf16.mxu0 0
        %381 = vmatpush1.bf16.msra.mxu0 %v359
        %382 = vmatprep.subr.bf16.mxu0 0
        %383 = vmatpush1.bf16.msra.mxu0 %v358
        %384 = vmatprep.subr.bf16.mxu0 0
        %385 = vmatpush1.bf16.msra.mxu0 %v357
        %386 = vmatprep.subr.bf16.mxu0 0
        %387 = vmatpush1.bf16.msra.mxu0 %v356
        %388 = vmatprep.subr.bf16.mxu0 0
        %389 = vmatpush2.bf16.msra.mxu0 0
        %390 = vmatprep.subr.bf16.mxu0 0
        %391 = vmatpush2.bf16.msra.mxu0 0
        %392 = vmatprep.subr.bf16.mxu0 0
        %393 = vmatpush2.bf16.msra.mxu0 0
        %394 = vmatprep.subr.bf16.mxu0 0
        %395 = vmatpush2.bf16.msra.mxu0 0
        %396 = vmatprep.subr.bf16.mxu0 0
        %397 = vmatpush2.bf16.msra.mxu0 0
        %398 = vmatprep.subr.bf16.mxu0 0
        %399 = vmatpush2.bf16.msra.mxu0 0
        %400 = vmatprep.subr.bf16.mxu0 0
        %401 = vmatpush2.bf16.msra.mxu0 0
        %402 = vmatprep.subr.bf16.mxu0 0
        %403 = vmatpush2.bf16.msra.mxu0 0
        %404 = vmatprep.mubr.bf16.mxu0 0
        %405 = vmatmul.mubr.bf16.gmra.mxu0 %v293
        %v406 = vpop.f32.mrf.mxu0
        %v407 = vadd.f32 %v322, %v406
        %v408 = vpop.f32.mrf.mxu0
        %v409 = vpop.f32.mrf.mxu0
        %v410 = vadd.f32 %v322, %v409
        %v411 = vpop.f32.mrf.mxu0
        %412 = vmatprep.mubr.bf16.mxu0 0
        %413 = vmatmul.mubr.bf16.gmra.mxu0 %v294
        %v414 = vpop.f32.mrf.mxu0
        %v415 = vadd.f32 %v322, %v414
        %v416 = vpop.f32.mrf.mxu0
        %v417 = vpop.f32.mrf.mxu0
        %v418 = vadd.f32 %v322, %v417
        %v419 = vpop.f32.mrf.mxu0
        %420 = vmatprep.mubr.bf16.mxu0 0
        %421 = vmatmul.mubr.bf16.gmra.mxu0 %v295
        %v422 = vpop.f32.mrf.mxu0
        %v423 = vadd.f32 %v322, %v422
        %v424 = vpop.f32.mrf.mxu0
        %v425 = vpop.f32.mrf.mxu0
        %v426 = vadd.f32 %v322, %v425
        %v427 = vpop.f32.mrf.mxu0
        %428 = vmatprep.mubr.bf16.mxu0 0
        %429 = vmatmul.mubr.bf16.gmra.mxu0 %v296
        %v430 = vpop.f32.mrf.mxu0
        %v431 = vadd.f32 %v322, %v430
        %v432 = vpop.f32.mrf.mxu0
        %v433 = vpop.f32.mrf.mxu0
        %v434 = vadd.f32 %v322, %v433
        %v435 = vpop.f32.mrf.mxu0
        %436 = vmatprep.mubr.bf16.mxu0 0
        %437 = vmatmul.mubr.bf16.gmra.mxu0 %v297
        %v438 = vpop.f32.mrf.mxu0
        %v439 = vadd.f32 %v322, %v438
        %v440 = vpop.f32.mrf.mxu0
        %v441 = vpop.f32.mrf.mxu0
        %v442 = vadd.f32 %v322, %v441
        %v443 = vpop.f32.mrf.mxu0
        %444 = vmatprep.mubr.bf16.mxu0 0
        %445 = vmatmul.mubr.bf16.gmra.mxu0 %v298
        %v446 = vpop.f32.mrf.mxu0
        %v447 = vadd.f32 %v322, %v446
        %v448 = vpop.f32.mrf.mxu0
        %v449 = vpop.f32.mrf.mxu0
        %v450 = vadd.f32 %v322, %v449
        %v451 = vpop.f32.mrf.mxu0
        %452 = vmatprep.mubr.bf16.mxu0 0
        %453 = vmatmul.mubr.bf16.gmra.mxu0 %v299
        %v454 = vpop.f32.mrf.mxu0
        %v455 = vadd.f32 %v322, %v454
        %v456 = vpop.f32.mrf.mxu0
        %v457 = vpop.f32.mrf.mxu0
        %v458 = vadd.f32 %v322, %v457
        %v459 = vpop.f32.mrf.mxu0
        %460 = vmatprep.mubr.bf16.mxu0 0
        %461 = vmatmul.mubr.bf16.gmra.mxu0 %v300
        %v462 = vpop.f32.mrf.mxu0
        %v463 = vadd.f32 %v322, %v462
        %v464 = vpop.f32.mrf.mxu0
        %v465 = vpop.f32.mrf.mxu0
        %v466 = vadd.f32 %v322, %v465
        %v467 = vpop.f32.mrf.mxu0
        %468 = vdwg.mxu0
        %v469 = vmax.f32 %v407, 0.0
        %v470 = vmax.f32 %v410, 0.0
        %v471 = vmax.f32 %v415, 0.0
        %v472 = vmax.f32 %v418, 0.0
        %v473 = vmax.f32 %v423, 0.0
        %v474 = vmax.f32 %v426, 0.0
        %v475 = vmax.f32 %v431, 0.0
        %v476 = vmax.f32 %v434, 0.0
        %v477 = vmax.f32 %v439, 0.0
        %v478 = vmax.f32 %v442, 0.0
        %v479 = vmax.f32 %v447, 0.0
        %v480 = vmax.f32 %v450, 0.0
        %v481 = vmax.f32 %v455, 0.0
        %v482 = vmax.f32 %v458, 0.0
        %v483 = vmax.f32 %v463, 0.0
        %v484 = vmax.f32 %v466, 0.0
        %v485 = vpack.c.bf16 %v470, %v469
        %v486 = vpack.c.bf16 %v472, %v471
        %v487 = vpack.c.bf16 %v474, %v473
        %v488 = vpack.c.bf16 %v476, %v475
        %v489 = vpack.c.bf16 %v478, %v477
        %v490 = vpack.c.bf16 %v480, %v479
        %v491 = vpack.c.bf16 %v482, %v481
        %v492 = vpack.c.bf16 %v484, %v483
        %v493 = vld [vmem:[#allocation6] sm:$0xf]
        %v494 = vld [vmem:[#allocation6 + $0x4] sm:$0xf]
        %v495 = vld [vmem:[#allocation6 + $0x8] sm:$0xf]
        %v496 = vld [vmem:[#allocation6 + $0xc] sm:$0xf]
        %v497 = vld [vmem:[#allocation6 + $0x10] sm:$0xf]
        %v498 = vld [vmem:[#allocation6 + $0x14] sm:$0xf]
        %v499 = vld [vmem:[#allocation6 + $0x18] sm:$0xf]
        %v500 = vld [vmem:[#allocation6 + $0x1c] sm:$0xf]
        %v501 = vld [vmem:[#allocation6 + $0x20] sm:$0xf]
        %v502 = vld [vmem:[#allocation6 + $0x24] sm:$0xf]
        %v503 = vld [vmem:[#allocation6 + $0x28] sm:$0xf]
        %v504 = vld [vmem:[#allocation6 + $0x2c] sm:$0xf]
        %v505 = vld [vmem:[#allocation6 + $0x30] sm:$0xf]
        %v506 = vld [vmem:[#allocation6 + $0x34] sm:$0xf]
        %v507 = vld [vmem:[#allocation6 + $0x38] sm:$0xf]
        %v508 = vld [vmem:[#allocation6 + $0x3c] sm:$0xf]
        %v509 = vld [vmem:[%s4] sm:$0x1]
        %v511 = vlaneseq
        %v512 = vshrl.u32 %v511, 7
        %v513 = vsub.s32 0, %v512
        %v514 = vrot.slane %v509, %v513
        %v532 = vunpack.c.l.b16 %v493
        %v533 = vunpack.c.l.b16 %v494
        %v534 = vunpack.c.l.b16 %v495
        %v535 = vunpack.c.l.b16 %v496
        %v536 = vunpack.c.l.b16 %v497
        %v537 = vunpack.c.l.b16 %v498
        %v538 = vunpack.c.l.b16 %v499
        %v539 = vunpack.c.l.b16 %v500
        %v540 = vunpack.c.l.b16 %v501
        %v541 = vunpack.c.l.b16 %v502
        %v542 = vunpack.c.l.b16 %v503
        %v543 = vunpack.c.l.b16 %v504
        %v544 = vunpack.c.l.b16 %v505
        %v545 = vunpack.c.l.b16 %v506
        %v546 = vunpack.c.l.b16 %v507
        %v547 = vunpack.c.l.b16 %v508
        %v548 = vpack.c.b16 %v533, %v532
        %v549 = vpack.c.b16 %v535, %v534
        %v550 = vpack.c.b16 %v537, %v536
        %v551 = vpack.c.b16 %v539, %v538
        %v552 = vpack.c.b16 %v541, %v540
        %v553 = vpack.c.b16 %v543, %v542
        %v554 = vpack.c.b16 %v545, %v544
        %v555 = vpack.c.b16 %v547, %v546
        %564 = vmatprep.subr.bf16.mxu0 0
        %565 = vmatpush1.bf16.msra.mxu0 %v555
        %566 = vmatprep.subr.bf16.mxu0 0
        %567 = vmatpush1.bf16.msra.mxu0 %v554
        %568 = vmatprep.subr.bf16.mxu0 0
        %569 = vmatpush1.bf16.msra.mxu0 %v553
        %570 = vmatprep.subr.bf16.mxu0 0
        %571 = vmatpush1.bf16.msra.mxu0 %v552
        %572 = vmatprep.subr.bf16.mxu0 0
        %573 = vmatpush1.bf16.msra.mxu0 %v551
        %574 = vmatprep.subr.bf16.mxu0 0
        %575 = vmatpush1.bf16.msra.mxu0 %v550
        %576 = vmatprep.subr.bf16.mxu0 0
        %577 = vmatpush1.bf16.msra.mxu0 %v549
        %578 = vmatprep.subr.bf16.mxu0 0
        %579 = vmatpush1.bf16.msra.mxu0 %v548
        %580 = vmatprep.subr.bf16.mxu0 0
        %581 = vmatpush2.bf16.msra.mxu0 0
        %582 = vmatprep.subr.bf16.mxu0 0
        %583 = vmatpush2.bf16.msra.mxu0 0
        %584 = vmatprep.subr.bf16.mxu0 0
        %585 = vmatpush2.bf16.msra.mxu0 0
        %586 = vmatprep.subr.bf16.mxu0 0
        %587 = vmatpush2.bf16.msra.mxu0 0
        %588 = vmatprep.subr.bf16.mxu0 0
        %589 = vmatpush2.bf16.msra.mxu0 0
        %590 = vmatprep.subr.bf16.mxu0 0
        %591 = vmatpush2.bf16.msra.mxu0 0
        %592 = vmatprep.subr.bf16.mxu0 0
        %593 = vmatpush2.bf16.msra.mxu0 0
        %594 = vmatprep.subr.bf16.mxu0 0
        %595 = vmatpush2.bf16.msra.mxu0 0
        %596 = vmatprep.mubr.bf16.mxu0 0
        %597 = vmatmul.mubr.bf16.gmra.mxu0 %v485
        %v598 = vpop.f32.mrf.mxu0
        %v599 = vadd.f32 %v514, %v598
        %v600 = vpop.f32.mrf.mxu0
        %v601 = vpop.f32.mrf.mxu0
        %v602 = vadd.f32 %v514, %v601
        %v603 = vpop.f32.mrf.mxu0
        %604 = vmatprep.mubr.bf16.mxu0 0
        %605 = vmatmul.mubr.bf16.gmra.mxu0 %v486
        %v606 = vpop.f32.mrf.mxu0
        %v607 = vadd.f32 %v514, %v606
        %v608 = vpop.f32.mrf.mxu0
        %v609 = vpop.f32.mrf.mxu0
        %v610 = vadd.f32 %v514, %v609
        %v611 = vpop.f32.mrf.mxu0
        %612 = vmatprep.mubr.bf16.mxu0 0
        %613 = vmatmul.mubr.bf16.gmra.mxu0 %v487
        %v614 = vpop.f32.mrf.mxu0
        %v615 = vadd.f32 %v514, %v614
        %v616 = vpop.f32.mrf.mxu0
        %v617 = vpop.f32.mrf.mxu0
        %v618 = vadd.f32 %v514, %v617
        %v619 = vpop.f32.mrf.mxu0
        %620 = vmatprep.mubr.bf16.mxu0 0
        %621 = vmatmul.mubr.bf16.gmra.mxu0 %v488
        %v622 = vpop.f32.mrf.mxu0
        %v623 = vadd.f32 %v514, %v622
        %v624 = vpop.f32.mrf.mxu0
        %v625 = vpop.f32.mrf.mxu0
        %v626 = vadd.f32 %v514, %v625
        %v627 = vpop.f32.mrf.mxu0
        %628 = vmatprep.mubr.bf16.mxu0 0
        %629 = vmatmul.mubr.bf16.gmra.mxu0 %v489
        %v630 = vpop.f32.mrf.mxu0
        %v631 = vadd.f32 %v514, %v630
        %v632 = vpop.f32.mrf.mxu0
        %v633 = vpop.f32.mrf.mxu0
        %v634 = vadd.f32 %v514, %v633
        %v635 = vpop.f32.mrf.mxu0
        %636 = vmatprep.mubr.bf16.mxu0 0
        %637 = vmatmul.mubr.bf16.gmra.mxu0 %v490
        %v638 = vpop.f32.mrf.mxu0
        %v639 = vadd.f32 %v514, %v638
        %v640 = vpop.f32.mrf.mxu0
        %v641 = vpop.f32.mrf.mxu0
        %v642 = vadd.f32 %v514, %v641
        %v643 = vpop.f32.mrf.mxu0
        %644 = vmatprep.mubr.bf16.mxu0 0
        %645 = vmatmul.mubr.bf16.gmra.mxu0 %v491
        %v646 = vpop.f32.mrf.mxu0
        %v647 = vadd.f32 %v514, %v646
        %v648 = vpop.f32.mrf.mxu0
        %v649 = vpop.f32.mrf.mxu0
        %v650 = vadd.f32 %v514, %v649
        %v651 = vpop.f32.mrf.mxu0
        %652 = vmatprep.mubr.bf16.mxu0 0
        %653 = vmatmul.mubr.bf16.gmra.mxu0 %v492
        %v654 = vpop.f32.mrf.mxu0
        %v655 = vadd.f32 %v514, %v654
        %v656 = vpop.f32.mrf.mxu0
        %v657 = vpop.f32.mrf.mxu0
        %v658 = vadd.f32 %v514, %v657
        %v659 = vpop.f32.mrf.mxu0
        %660 = vdwg.mxu0
        %661 = vmax.xlane.f32.xlu0 %v599
        %v662 = vpop.xlane.xlu0 %661
        %663 = vmax.xlane.f32.xlu0 %v602
        %v664 = vpop.xlane.xlu0 %663
        %665 = vmax.xlane.f32.xlu0 %v607
        %v666 = vpop.xlane.xlu0 %665
        %667 = vmax.xlane.f32.xlu0 %v610
        %v668 = vpop.xlane.xlu0 %667
        %669 = vmax.xlane.f32.xlu0 %v615
        %v670 = vpop.xlane.xlu0 %669
        %671 = vmax.xlane.f32.xlu0 %v618
        %v672 = vpop.xlane.xlu0 %671
        %673 = vmax.xlane.f32.xlu0 %v623
        %v674 = vpop.xlane.xlu0 %673
        %675 = vmax.xlane.f32.xlu0 %v626
        %v676 = vpop.xlane.xlu0 %675
        %677 = vmax.xlane.f32.xlu0 %v631
        %v678 = vpop.xlane.xlu0 %677
        %679 = vmax.xlane.f32.xlu0 %v634
        %v680 = vpop.xlane.xlu0 %679
        %681 = vmax.xlane.f32.xlu0 %v639
        %v682 = vpop.xlane.xlu0 %681
        %683 = vmax.xlane.f32.xlu0 %v642
        %v684 = vpop.xlane.xlu0 %683
        %685 = vmax.xlane.f32.xlu0 %v647
        %v686 = vpop.xlane.xlu0 %685
        %687 = vmax.xlane.f32.xlu0 %v650
        %v688 = vpop.xlane.xlu0 %687
        %689 = vmax.xlane.f32.xlu0 %v655
        %v690 = vpop.xlane.xlu0 %689
        %691 = vmax.xlane.f32.xlu0 %v658
        %v692 = vpop.xlane.xlu0 %691
        %v693 = vsub.f32 %v599, %v662
        %v694 = vsub.f32 %v602, %v664
        %v695 = vsub.f32 %v607, %v666
        %v696 = vsub.f32 %v610, %v668
        %v697 = vsub.f32 %v615, %v670
        %v698 = vsub.f32 %v618, %v672
        %v699 = vsub.f32 %v623, %v674
        %v700 = vsub.f32 %v626, %v676
        %v701 = vsub.f32 %v631, %v678
        %v702 = vsub.f32 %v634, %v680
        %v703 = vsub.f32 %v639, %v682
        %v704 = vsub.f32 %v642, %v684
        %v705 = vsub.f32 %v647, %v686
        %v706 = vsub.f32 %v650, %v688
        %v707 = vsub.f32 %v655, %v690
        %v708 = vsub.f32 %v658, %v692
        %v709 = vmul.f32 %v693, 1.442695
        %v710 = vpow.pop %v709
        %v711 = vmul.f32 %v694, 1.442695
        %v712 = vpow.pop %v711
        %v713 = vmul.f32 %v695, 1.442695
        %v714 = vpow.pop %v713
        %v715 = vmul.f32 %v696, 1.442695
        %v716 = vpow.pop %v715
        %v717 = vmul.f32 %v697, 1.442695
        %v718 = vpow.pop %v717
        %v719 = vmul.f32 %v698, 1.442695
        %v720 = vpow.pop %v719
        %v721 = vmul.f32 %v699, 1.442695
        %v722 = vpow.pop %v721
        %v723 = vmul.f32 %v700, 1.442695
        %v724 = vpow.pop %v723
        %v725 = vmul.f32 %v701, 1.442695
        %v726 = vpow.pop %v725
        %v727 = vmul.f32 %v702, 1.442695
        %v728 = vpow.pop %v727
        %v729 = vmul.f32 %v703, 1.442695
        %v730 = vpow.pop %v729
        %v731 = vmul.f32 %v704, 1.442695
        %v732 = vpow.pop %v731
        %v733 = vmul.f32 %v705, 1.442695
        %v734 = vpow.pop %v733
        %v735 = vmul.f32 %v706, 1.442695
        %v736 = vpow.pop %v735
        %v737 = vmul.f32 %v707, 1.442695
        %v738 = vpow.pop %v737
        %v739 = vmul.f32 %v708, 1.442695
        %v740 = vpow.pop %v739
        %741 = vadd.xlane.f32.xlu0 %v710
        %v742 = vpop.xlane.xlu0 %741
        %743 = vadd.xlane.f32.xlu0 %v712
        %v744 = vpop.xlane.xlu0 %743
        %745 = vadd.xlane.f32.xlu0 %v714
        %v746 = vpop.xlane.xlu0 %745
        %747 = vadd.xlane.f32.xlu0 %v716
        %v748 = vpop.xlane.xlu0 %747
        %749 = vadd.xlane.f32.xlu0 %v718
        %v750 = vpop.xlane.xlu0 %749
        %751 = vadd.xlane.f32.xlu0 %v720
        %v752 = vpop.xlane.xlu0 %751
        %753 = vadd.xlane.f32.xlu0 %v722
        %v754 = vpop.xlane.xlu0 %753
        %755 = vadd.xlane.f32.xlu0 %v724
        %v756 = vpop.xlane.xlu0 %755
        %757 = vadd.xlane.f32.xlu0 %v726
        %v758 = vpop.xlane.xlu0 %757
        %759 = vadd.xlane.f32.xlu0 %v728
        %v760 = vpop.xlane.xlu0 %759
        %761 = vadd.xlane.f32.xlu0 %v730
        %v762 = vpop.xlane.xlu0 %761
        %763 = vadd.xlane.f32.xlu0 %v732
        %v764 = vpop.xlane.xlu0 %763
        %765 = vadd.xlane.f32.xlu0 %v734
        %v766 = vpop.xlane.xlu0 %765
        %767 = vadd.xlane.f32.xlu0 %v736
        %v768 = vpop.xlane.xlu0 %767
        %769 = vadd.xlane.f32.xlu0 %v738
        %v770 = vpop.xlane.xlu0 %769
        %771 = vadd.xlane.f32.xlu0 %v740
        %v772 = vpop.xlane.xlu0 %771
        %v773 = vlog2.pop %v742
        %v774 = vmul.f32 %v773, 0.6931472
        %v775 = vlog2.pop %v744
        %v776 = vmul.f32 %v775, 0.6931472
        %v777 = vlog2.pop %v746
        %v778 = vmul.f32 %v777, 0.6931472
        %v779 = vlog2.pop %v748
        %v780 = vmul.f32 %v779, 0.6931472
        %v781 = vlog2.pop %v750
        %v782 = vmul.f32 %v781, 0.6931472
        %v783 = vlog2.pop %v752
        %v784 = vmul.f32 %v783, 0.6931472
        %v785 = vlog2.pop %v754
        %v786 = vmul.f32 %v785, 0.6931472
        %v787 = vlog2.pop %v756
        %v788 = vmul.f32 %v787, 0.6931472
        %v789 = vlog2.pop %v758
        %v790 = vmul.f32 %v789, 0.6931472
        %v791 = vlog2.pop %v760
        %v792 = vmul.f32 %v791, 0.6931472
        %v793 = vlog2.pop %v762
        %v794 = vmul.f32 %v793, 0.6931472
        %v795 = vlog2.pop %v764
        %v796 = vmul.f32 %v795, 0.6931472
        %v797 = vlog2.pop %v766
        %v798 = vmul.f32 %v797, 0.6931472
        %v799 = vlog2.pop %v768
        %v800 = vmul.f32 %v799, 0.6931472
        %v801 = vlog2.pop %v770
        %v802 = vmul.f32 %v801, 0.6931472
        %v803 = vlog2.pop %v772
        %v804 = vmul.f32 %v803, 0.6931472
        %v805 = vsub.f32 %v693, %v774
        %v806 = vsub.f32 %v694, %v776
        %v807 = vsub.f32 %v695, %v778
        %v808 = vsub.f32 %v696, %v780
        %v809 = vsub.f32 %v697, %v782
        %v810 = vsub.f32 %v698, %v784
        %v811 = vsub.f32 %v699, %v786
        %v812 = vsub.f32 %v700, %v788
        %v813 = vsub.f32 %v701, %v790
        %v814 = vsub.f32 %v702, %v792
        %v815 = vsub.f32 %v703, %v794
        %v816 = vsub.f32 %v704, %v796
        %v817 = vsub.f32 %v705, %v798
        %v818 = vsub.f32 %v706, %v800
        %v819 = vsub.f32 %v707, %v802
        %v820 = vsub.f32 %v708, %v804
        %vm821 = vcmask 31744
        %822 = vst.msk [vmem:[%s274] sm:$0xff] %vm821, %v805
        %823 = vst.msk [vmem:[%s274 + $0x8] sm:$0xff] %vm821, %v806
        %824 = vst.msk [vmem:[%s274 + $0x10] sm:$0xff] %vm821, %v807
        %825 = vst.msk [vmem:[%s274 + $0x18] sm:$0xff] %vm821, %v808
        %826 = vst.msk [vmem:[%s274 + $0x20] sm:$0xff] %vm821, %v809
        %827 = vst.msk [vmem:[%s274 + $0x28] sm:$0xff] %vm821, %v810
        %828 = vst.msk [vmem:[%s274 + $0x30] sm:$0xff] %vm821, %v811
        %829 = vst.msk [vmem:[%s274 + $0x38] sm:$0xff] %vm821, %v812
        %830 = vst.msk [vmem:[%s274 + $0x40] sm:$0xff] %vm821, %v813
        %831 = vst.msk [vmem:[%s274 + $0x48] sm:$0xff] %vm821, %v814
        %832 = vst.msk [vmem:[%s274 + $0x50] sm:$0xff] %vm821, %v815
        %833 = vst.msk [vmem:[%s274 + $0x58] sm:$0xff] %vm821, %v816
        %834 = vst.msk [vmem:[%s274 + $0x60] sm:$0xff] %vm821, %v817
        %835 = vst.msk [vmem:[%s274 + $0x68] sm:$0xff] %vm821, %v818
        %836 = vst.msk [vmem:[%s274 + $0x70] sm:$0xff] %vm821, %v819
        %837 = vst.msk [vmem:[%s274 + $0x78] sm:$0xff] %vm821, %v820
        %s838 = smul.u32 16, %s20
        %p839 = scmp.lt.s32.totalorder %s838, 31
        %s840 = scalar_select %p839, %s838, 31
        %s841 = smul.addr %s840, 8
        %s842 = scalar_lea.vmem %s5, %s841
        // Predicated region
        $region53: #{prediction_head_forward.1} parent=39 // pred_check
          %p843 = pneg %p148
        $region54: #{prediction_head_forward.1} parent=39 // pred_check_branch
          %845 = sbr.rel (%p843) target = $region56
        $region55: #{prediction_head_forward.1} parent=39 // pred_region
          %s846 = smul.u32 16, %s20
        $region56: #{prediction_head_forward.1} parent=39 // pred_fallthru
          _
      $region40: #{prediction_head_forward.1} parent=5 // pred_fallthru
        _
      %p847 = scmp.le.s32.totalorder 2, %s15
      // Predicated region
      $region57: #{prediction_head_forward.1} parent=5 // pred_check
        %p848 = pneg %p847
      $region58: #{prediction_head_forward.1} parent=5 // pred_check_branch
        %850 = sbr.rel (%p848) target = $region60
      $region59: #{prediction_head_forward.1} parent=5 // pred_region
        %s851 = ssub.s32 %s15, 2
        // Predicated region
        $region61: #{prediction_head_forward.1} parent=59 // pred_check
          %p852 = pneg %p154
        $region62: #{prediction_head_forward.1} parent=59 // pred_check_branch
          %854 = sbr.rel (%p852) target = $region64
        $region63: #{prediction_head_forward.1} parent=59 // pred_region
          %s855 = smul.u32 16, %s21
          %p856 = scmp.lt.s32.totalorder %s855, 31
          %s857 = scalar_select %p856, %s855, 31
          %s858 = smul.addr %s857, 8
          %s859 = scalar_lea.vmem %s5, %s858
        $region64: #{prediction_head_forward.1} parent=59 // pred_fallthru
          _
      $region60: #{prediction_head_forward.1} parent=5 // pred_fallthru
        _
    $region6: #{prediction_head_forward.1} parent=1 // loop_footer
      %s19 = sadd.s32 1, %s15
    $region7: #{prediction_head_forward.1} parent=1 // loop_footer_branch
      %14 = sbr.rel target = $region3
    $region8: #{prediction_head_forward.1} parent=1 // loop_exit
      _
    %860 = vsyncpa [#allocation3], 1
    %s861 = scalar_lea.sflag [#allocation3], 1
    %862 = vsyncpa %s861, 1
    %863 = vsyncpa [#allocation5], 1

</llo_original>
